<compile_context>
chip_gen: v7x
topology: tpu7x:2x2x1
jax: 0.10.0
libtpu: 0.0.40
codegen_flags: <defaults>
</compile_context>

<pallas_src>
import functools
import math

import jax
import jax.numpy as jnp
from jax import lax
from jax.experimental import pallas as pl
from jax.experimental.pallas import tpu as pltpu


_LANE = 128   # lane width (minor-dim granularity)
_MXU = 256    # MXU M/N granularity on v6e/v7x (also a multiple of v5e's 128)


def _activation_fn(name):
    name = name.lower()
    if name == "relu":
        return lambda y: jnp.maximum(y, 0.0)
    if name == "relu6":
        return lambda y: jnp.clip(y, 0.0, 6.0)
    if name == "sigmoid":
        return jax.nn.sigmoid
    raise NotImplementedError(f"Activation {name} not implemented")


def _round_up(x, m):
    return ((x + m - 1) // m) * m


def _vmem_budget():
    """Scoped-VMEM limit + tile budget derived from the chip's physical VMEM."""
    try:
        phys = pltpu.get_tpu_info().vmem_capacity_bytes
    except Exception:
        phys = 64 * 1024 * 1024      # assume the smallest (v7x) if the query fails
    limit = min(int(phys * 3 // 4), 96 * 1024 * 1024)   # 48 MiB on v7x, 96 MiB v5e/v6e
    budget = int(limit * 3 // 4)                         # headroom for compiler scratch
    return limit, budget


# ---------------- pass 1: conv matmul (+ per-channel batch-stat accumulation) ----------------

def _conv_stats_kernel(p_ref, w_ref, y_ref, sum_ref, sq_ref):
    """(tile_in, Kp) bf16 x (Kp, Cp) bf16 -> f32 MXU matmul; bf16 writeback.

    Stats are computed from the f32 result (before the bf16 cast) and accumulated
    into a per-core resident (1, 8, Cp) block along the inner "arbitrary" axis.
    """
    @pl.when(pl.program_id(1) == 0)
    def _():
        sum_ref[...] = jnp.zeros_like(sum_ref)
        sq_ref[...] = jnp.zeros_like(sq_ref)

    y = jnp.dot(p_ref[...], w_ref[...], preferred_element_type=jnp.float32)
    s1 = jnp.sum(y, axis=0, keepdims=True)        # (1, Cp) f32
    s2 = jnp.sum(y * y, axis=0, keepdims=True)    # (1, Cp) f32
    sum_ref[...] += s1[None]                      # broadcast over the 8 sublanes
    sq_ref[...] += s2[None]
    y_ref[...] = y.astype(y_ref.dtype)            # bf16 intermediate writeback


def _conv_bias_kernel(p_ref, w_ref, b_ref, y_ref):
    y = jnp.dot(p_ref[...], w_ref[...], preferred_element_type=jnp.float32)
    y_ref[...] = (y + b_ref[...]).astype(y_ref.dtype)


# ---------------- pass 2: folded BN scale/shift + activation + max-pool epilogue ----------------

def _finalize_kernel(*refs, activation, apply_affine):
    if apply_affine:
        y_ref, scale_ref, shift_ref, o_ref = refs
    else:
        y_ref, o_ref = refs
    y = y_ref[...].astype(jnp.float32)            # (pool_sq, tile_pool, Cp)
    if apply_affine:
        y = y * scale_ref[...] + shift_ref[...]   # folded BN: one FMA per element
    if activation is not None:
        y = _activation_fn(activation)(y)
    # Rows are pool-window-major, so MaxPool2d is a max over the slab axis.
    o_ref[...] = jnp.max(y, axis=0).astype(o_ref.dtype)


def conv_block_forward(x_nchw, weight, bias, gamma, beta, *,
                       stride=1, padding=0, use_bn=True, max_pool=None,
                       activation="relu", eps=1e-5,
                       mxu_dtype=jnp.bfloat16,
                       intermediate_dtype=jnp.bfloat16,
                       tile_rows=None, pool_tile_rows=None):
    """Pallas implementation of ConvBlock.forward.  x_nchw: (N, Cin, H, W) f32."""
    n, cin, h, w = x_nchw.shape
    cout, cin_w, kh, kw = weight.shape
    assert cin_w == cin, "grouped convolution (groups > 1) not supported"
    s = stride
    ho = (h + 2 * padding - kh) // s + 1
    wo = (w + 2 * padding - kw) // s + 1

    p = max_pool if max_pool is not None else 1
    # TODO(synk): PyTorch MaxPool2d floors ragged edges; only even division supported.
    assert ho % p == 0 and wo % p == 0, "maxpool must evenly divide conv output"
    hq, wq = ho // p, wo // p
    m_pool = n * hq * wq          # pooled output rows (true)
    pool_sq = p * p
    m_in = pool_sq * m_pool       # conv output rows (true)

    k_dim = kh * kw * cin
    k_pad = _round_up(max(k_dim, _LANE), _LANE)   # lane-aligned contraction dim
    cp = _round_up(max(cout, _LANE), _LANE)       # lane-aligned Cout (dense vst)

    vmem_limit, budget = _vmem_budget()

    # ---- tile sizing (VMEM-budget driven; tiles are multiples of MXU/sublane granules) ----
    row_bytes = 2 * (k_pad * 2) + 2 * (cp * 2)        # dbl-buffered bf16 patch + y rows
    resident = 2 * k_pad * cp * 2 + (64 << 10)        # resident weight block + slack
    align = max(16, _MXU // math.gcd(pool_sq, _MXU))  # makes tile_in a multiple of 256
    if tile_rows is not None:
        tile_pool1 = max(16, (max(tile_rows // pool_sq, 16) // 16) * 16)
    else:
        fit = max(align, (budget - resident) // (row_bytes * pool_sq))
        tile_pool1 = max(align,
                         (min(fit, 4096, _round_up(m_pool, align)) // align) * align)
    m_pool_pad = _round_up(m_pool, tile_pool1)
    n_tiles = m_pool_pad // tile_pool1
    tile_in = pool_sq * tile_pool1                    # flat matmul-M per grid step
    m_in_pad = pool_sq * m_pool_pad

    # pass-2 tile: an integer multiple of tile_pool1 that divides m_pool_pad and fits VMEM
    p2_cap = max(pool_tile_rows if pool_tile_rows is not None else 4096, tile_pool1)
    tile_pool2 = tile_pool1
    for d in range(1, n_tiles + 1):
        if n_tiles % d:
            continue
        t2 = d * tile_pool1
        blk = 2 * pool_sq * t2 * cp * 2 + 2 * t2 * cp * 4
        if t2 <= p2_cap and blk <= budget:
            tile_pool2 = t2
    n_tiles2 = m_pool_pad // tile_pool2

    # ---- wrapper glue: NCHW -> NHWC, spatial pad, im2col, pool-major row order ----
    x = jnp.transpose(x_nchw, (0, 2, 3, 1))
    x = jnp.pad(x, ((0, 0), (padding, padding), (padding, padding), (0, 0)))

    # im2col: k index = (i*kw + j)*cin + c, matching the weight reshape below.
    # TODO(synk): still materialized in HBM; in-kernel shifted matmul would remove it.
    cols = []
    for i in range(kh):
        for j in range(kw):
            cols.append(x[:, i:i + s * ho:s, j:j + s * wo:s, :])
    patches = jnp.concatenate(cols, axis=-1)                      # (N, Ho, Wo, K)

    if p > 1:
        patches = patches.reshape(n, hq, p, wq, p, k_dim)
        patches = jnp.transpose(patches, (2, 4, 0, 1, 3, 5))      # pool-window-major
    patches = patches.reshape(pool_sq, m_pool, k_dim)
    # Zero-pad pooled rows (contribute 0 to BN sums; bias is skipped in the BN path)
    # and the contraction dim, then cast to bf16 for the MXU.
    patches = jnp.pad(patches, ((0, 0), (0, m_pool_pad - m_pool), (0, k_pad - k_dim)))
    patches = patches.reshape(m_in_pad, k_pad).astype(mxu_dtype)

    w_mat = jnp.transpose(weight, (2, 3, 1, 0)).reshape(k_dim, cout)
    w_mat = jnp.pad(w_mat, ((0, k_pad - k_dim), (0, cp - cout))).astype(mxu_dtype)

    def _row(v):
        return jnp.pad(v.astype(jnp.float32).reshape(1, -1), ((0, 0), (0, cp - cout)))

    # ---------------- pass 1: conv (+ stats) over flat row tiles ----------------
    if use_bn:
        # Split stats over <=2 outer "parallel" steps so v7x's two TensorCores can each
        # own half the matmul; the <=2 partial stat rows are reduced in JAX glue below.
        n_par = 2 if (n_tiles % 2 == 0 and n_tiles >= 2) else 1
        steps = n_tiles // n_par
        y_rows, s1p, s2p = pl.pallas_call(
            _conv_stats_kernel,
            grid=(n_par, steps),
            in_specs=[pl.BlockSpec((tile_in, k_pad), lambda c, t: (c * steps + t, 0)),
                      pl.BlockSpec((k_pad, cp), lambda c, t: (0, 0))],        # resident
            out_specs=(pl.BlockSpec((tile_in, cp), lambda c, t: (c * steps + t, 0)),
                       pl.BlockSpec((1, 8, cp), lambda c, t: (c, 0, 0)),      # per-core acc
                       pl.BlockSpec((1, 8, cp), lambda c, t: (c, 0, 0))),
            out_shape=(jax.ShapeDtypeStruct((m_in_pad, cp), intermediate_dtype),
                       jax.ShapeDtypeStruct((n_par, 8, cp), jnp.float32),
                       jax.ShapeDtypeStruct((n_par, 8, cp), jnp.float32)),
            compiler_params=pltpu.CompilerParams(
                dimension_semantics=("parallel", "arbitrary"),
                vmem_limit_bytes=vmem_limit),
        )(patches, w_mat)
        # Finalize BN on tiny (1, Cp) rows in plain JAX and fold into scale/shift.
        # Padded rows are exact zeros (bias skipped) so only divide by the true m_in.
        inv_m = 1.0 / float(m_in)
        s1 = jnp.sum(s1p[:, 0, :], axis=0, keepdims=True)
        s2 = jnp.sum(s2p[:, 0, :], axis=0, keepdims=True)
        mean = s1 * inv_m
        # TODO(synk): E[x^2]-E[x]^2 in f32 is cancellation-prone when |mean| >> std.
        var = jnp.maximum(s2 * inv_m - mean * mean, 0.0)
        scale = _row(gamma) * lax.rsqrt(var + eps)
        shift = _row(beta) - mean * scale
    else:
        y_rows = pl.pallas_call(
            _conv_bias_kernel,
            grid=(n_tiles,),
            in_specs=[pl.BlockSpec((tile_in, k_pad), lambda t: (t, 0)),
                      pl.BlockSpec((k_pad, cp), lambda t: (0, 0)),
                      pl.BlockSpec((1, cp), lambda t: (0, 0))],
            out_specs=pl.BlockSpec((tile_in, cp), lambda t: (t, 0)),
            out_shape=jax.ShapeDtypeStruct((m_in_pad, cp), intermediate_dtype),
            compiler_params=pltpu.CompilerParams(
                dimension_semantics=("parallel",),
                vmem_limit_bytes=vmem_limit),
        )(patches, w_mat, _row(bias))
        scale = shift = None

    # ---------------- pass 2: scale/shift + activation + pool over pooled-row tiles ----------------
    y3 = y_rows.reshape(pool_sq, m_pool_pad, cp)      # contiguous reshape: no data movement
    in_specs = [pl.BlockSpec((pool_sq, tile_pool2, cp), lambda i: (0, i, 0))]
    args = (y3,)
    if use_bn:
        in_specs += [pl.BlockSpec((1, cp), lambda i: (0, 0)),
                     pl.BlockSpec((1, cp), lambda i: (0, 0))]
        args += (scale, shift)
    out_rows = pl.pallas_call(
        functools.partial(_finalize_kernel, activation=activation, apply_affine=use_bn),
        grid=(n_tiles2,),
        in_specs=in_specs,
        out_specs=pl.BlockSpec((tile_pool2, cp), lambda i: (i, 0)),
        out_shape=jax.ShapeDtypeStruct((m_pool_pad, cp), jnp.float32),
        compiler_params=pltpu.CompilerParams(
            dimension_semantics=("parallel",),        # row-parallel: megacore on v7x
            vmem_limit_bytes=vmem_limit),
    )(*args)

    # Slice off row/channel padding; NHWC -> NCHW (module contract).
    out = out_rows[:m_pool, :cout].reshape(n, hq, wq, cout)
    return jnp.transpose(out, (0, 3, 1, 2))


def conv_block_ref(x, weight, bias, gamma, beta, *, stride, padding,
                   use_bn, max_pool, activation, eps=1e-5):
    """Pure-JAX reference mirroring the PyTorch forward (train-mode BN)."""
    y = lax.conv_general_dilated(
        x, weight, window_strides=(stride, stride),
        padding=[(padding, padding), (padding, padding)],
        dimension_numbers=("NCHW", "OIHW", "NCHW"))
    y = y + bias.reshape(1, -1, 1, 1)
    if use_bn:
        mean = jnp.mean(y, axis=(0, 2, 3), keepdims=True)
        var = jnp.mean(jnp.square(y - mean), axis=(0, 2, 3), keepdims=True)
        y = (y - mean) * lax.rsqrt(var + eps) * gamma.reshape(1, -1, 1, 1) \
            + beta.reshape(1, -1, 1, 1)
    if activation is not None:
        y = _activation_fn(activation)(y)
    if max_pool is not None:
        y = lax.reduce_window(y, -jnp.inf, lax.max,
                              (1, 1, max_pool, max_pool),
                              (1, 1, max_pool, max_pool), "VALID")
    return y


if __name__ == "__main__":
    key = jax.random.PRNGKey(0)
    k1, k2, k3, k4, k5 = jax.random.split(key, 5)

    # Typical prototypical-nets ConvBlock config: 3x3 conv, pad 1, BN, ReLU, pool 2.
    N, Cin, H, W = 2, 4, 16, 16
    Cout, ksz, stride, pad, pool = 8, 3, 1, 1, 2

    x = jax.random.normal(k1, (N, Cin, H, W), jnp.float32)
    weight = 0.1 * jax.random.normal(k2, (Cout, Cin, ksz, ksz), jnp.float32)
    bias = 0.1 * jax.random.normal(k3, (Cout,), jnp.float32)
    gamma = 1.0 + 0.1 * jax.random.normal(k4, (Cout,), jnp.float32)
    beta = 0.1 * jax.random.normal(k5, (Cout,), jnp.float32)

    # Small explicit tiles so the demo exercises multi-step pipelined grids
    # (pass 1: (2, 2) grid incl. the per-core stats split; pass 2: 4 steps).
    out = conv_block_forward(x, weight, bias, gamma, beta,
                             stride=stride, padding=pad, use_bn=True,
                             max_pool=pool, activation="relu",
                             tile_rows=128, pool_tile_rows=32)
    out = jax.block_until_ready(out)
    assert out.shape == (N, Cout, H // pool, W // pool), out.shape

    # Reference on bf16-rounded conv operands (the kernel intentionally feeds the MXU
    # bf16).  The kernel also stores the conv intermediate in bf16 before the BN
    # normalize, so allow that rounding noise (<~1e-2 after normalization) on the max
    # error, but require a tight mean error to catch real bugs.
    x_c = x.astype(jnp.bfloat16).astype(jnp.float32)
    w_c = weight.astype(jnp.bfloat16).astype(jnp.float32)
    ref = conv_block_ref(x_c, w_c, bias, gamma, beta, stride=stride,
                         padding=pad, use_bn=True, max_pool=pool, activation="relu")
    err = jnp.abs(out - ref)
    assert jnp.allclose(out, ref, atol=3e-2, rtol=3e-2), float(jnp.max(err))
    assert float(jnp.mean(err)) < 5e-3, float(jnp.mean(err))
    print("KERNEL_OK")
</pallas_src>

<mosaic_0001>
module attributes {stable_mosaic.version = 11 : i64} {
  func.func @_conv_stats_kernel(%arg0: i32, %arg1: i32, %arg2: memref<128x128xbf16, #tpu.memory_space<vmem>>, %arg3: memref<128x128xbf16, #tpu.memory_space<vmem>>, %arg4: memref<128x128xbf16, #tpu.memory_space<vmem>>, %arg5: memref<1x8x128xf32, #tpu.memory_space<vmem>>, %arg6: memref<1x8x128xf32, #tpu.memory_space<vmem>>) attributes {dimension_semantics = [#tpu.dimension_semantics<parallel>, #tpu.dimension_semantics<arbitrary>], iteration_bounds = array<i64: 2, 2>, scalar_prefetch = 0 : i64, scratch_operands = 0 : i64, tpu.core_type = #tpu.core_type<tc>, window_params = [{transform_indices = @transform_0, window_bounds = array<i64: 128, 128>}, {pipeline_mode = #tpu.pipeline_mode<synchronous>, transform_indices = @transform_1, window_bounds = array<i64: 128, 128>}, {transform_indices = @transform_2, window_bounds = array<i64: 128, 128>}, {transform_indices = @transform_3, window_bounds = array<i64: 1, 8, 128>}, {transform_indices = @transform_4, window_bounds = array<i64: 1, 8, 128>}]} {
    %c0_i32 = arith.constant 0 : i32
    %0 = arith.cmpi eq, %arg1, %c0_i32 : i32
    %1 = arith.extui %0 : i1 to i32
    %c0_i32_0 = arith.constant 0 : i32
    %2 = arith.cmpi ne, %1, %c0_i32_0 : i32
    scf.if %2 {
      %cst_20 = arith.constant 0.000000e+00 : f32
      %23 = vector.broadcast %cst_20 : f32 to vector<1x8x128xf32>
      %c0_21 = arith.constant 0 : index
      %c0_22 = arith.constant 0 : index
      %c0_23 = arith.constant 0 : index
      %24 = vector.load %arg5[%c0_21, %c0_22, %c0_23] : memref<1x8x128xf32, #tpu.memory_space<vmem>>, vector<1x8x128xf32>
      tpu.vector_store %arg5[%c0_21, %c0_22, %c0_23], %23 {strides = array<i32>} : memref<1x8x128xf32, #tpu.memory_space<vmem>>, vector<1x8x128xf32>,
      %cst_24 = arith.constant 0.000000e+00 : f32
      %25 = vector.broadcast %cst_24 : f32 to vector<1x8x128xf32>
      %c0_25 = arith.constant 0 : index
      %c0_26 = arith.constant 0 : index
      %c0_27 = arith.constant 0 : index
      %26 = vector.load %arg6[%c0_25, %c0_26, %c0_27] : memref<1x8x128xf32, #tpu.memory_space<vmem>>, vector<1x8x128xf32>
      tpu.vector_store %arg6[%c0_25, %c0_26, %c0_27], %25 {strides = array<i32>} : memref<1x8x128xf32, #tpu.memory_space<vmem>>, vector<1x8x128xf32>,
    } else {
    }
    %c0 = arith.constant 0 : index
    %c0_1 = arith.constant 0 : index
    %3 = vector.load %arg2[%c0, %c0_1] : memref<128x128xbf16, #tpu.memory_space<vmem>>, vector<128x128xbf16>
    %c0_2 = arith.constant 0 : index
    %c0_3 = arith.constant 0 : index
    %4 = vector.load %arg3[%c0_2, %c0_3] : memref<128x128xbf16, #tpu.memory_space<vmem>>, vector<128x128xbf16>
    %cst = arith.constant dense<0.000000e+00> : vector<128x128xf32>
    %5 = tpu.matmul %3, %4, %cst {dimension_numbers = #tpu.dot_dimension_numbers<[1], [0], [0], [1], [0, 0, 1, 1], [], []>} : vector<128x128xbf16>, vector<128x128xbf16>, vector<128x128xf32> -> vector<128x128xf32>
    %cst_4 = arith.constant dense<0.000000e+00> : vector<128xf32>
    %6 = vector.multi_reduction <add>, %5, %cst_4 [0] : vector<128x128xf32> to vector<128xf32>
    %7 = vector.shape_cast %6 : vector<128xf32> to vector<1x128xf32>
    %8 = arith.mulf %5, %5 : vector<128x128xf32>
    %cst_5 = arith.constant dense<0.000000e+00> : vector<128xf32>
    %9 = vector.multi_reduction <add>, %8, %cst_5 [0] : vector<128x128xf32> to vector<128xf32>
    %10 = vector.shape_cast %9 : vector<128xf32> to vector<1x128xf32>
    %c0_6 = arith.constant 0 : index
    %c0_7 = arith.constant 0 : index
    %c0_8 = arith.constant 0 : index
    %11 = vector.load %arg5[%c0_6, %c0_7, %c0_8] : memref<1x8x128xf32, #tpu.memory_space<vmem>>, vector<1x8x128xf32>
    %12 = vector.shape_cast %7 : vector<1x128xf32> to vector<1x1x128xf32>
    %13 = vector.broadcast %12 : vector<1x1x128xf32> to vector<1x8x128xf32>
    %14 = arith.addf %11, %13 : vector<1x8x128xf32>
    %c0_9 = arith.constant 0 : index
    %c0_10 = arith.constant 0 : index
    %c0_11 = arith.constant 0 : index
    %15 = vector.load %arg5[%c0_9, %c0_10, %c0_11] : memref<1x8x128xf32, #tpu.memory_space<vmem>>, vector<1x8x128xf32>
    tpu.vector_store %arg5[%c0_9, %c0_10, %c0_11], %14 {strides = array<i32>} : memref<1x8x128xf32, #tpu.memory_space<vmem>>, vector<1x8x128xf32>,
    %c0_12 = arith.constant 0 : index
    %c0_13 = arith.constant 0 : index
    %c0_14 = arith.constant 0 : index
    %16 = vector.load %arg6[%c0_12, %c0_13, %c0_14] : memref<1x8x128xf32, #tpu.memory_space<vmem>>, vector<1x8x128xf32>
    %17 = vector.shape_cast %10 : vector<1x128xf32> to vector<1x1x128xf32>
    %18 = vector.broadcast %17 : vector<1x1x128xf32> to vector<1x8x128xf32>
    %19 = arith.addf %16, %18 : vector<1x8x128xf32>
    %c0_15 = arith.constant 0 : index
    %c0_16 = arith.constant 0 : index
    %c0_17 = arith.constant 0 : index
    %20 = vector.load %arg6[%c0_15, %c0_16, %c0_17] : memref<1x8x128xf32, #tpu.memory_space<vmem>>, vector<1x8x128xf32>
    tpu.vector_store %arg6[%c0_15, %c0_16, %c0_17], %19 {strides = array<i32>} : memref<1x8x128xf32, #tpu.memory_space<vmem>>, vector<1x8x128xf32>,
    %21 = arith.truncf %5 : vector<128x128xf32> to vector<128x128xbf16>
    %c0_18 = arith.constant 0 : index
    %c0_19 = arith.constant 0 : index
    %22 = vector.load %arg4[%c0_18, %c0_19] : memref<128x128xbf16, #tpu.memory_space<vmem>>, vector<128x128xbf16>
    tpu.vector_store %arg4[%c0_18, %c0_19], %21 {strides = array<i32>} : memref<128x128xbf16, #tpu.memory_space<vmem>>, vector<128x128xbf16>,
    return
  }
  func.func @transform_0(%arg0: i32, %arg1: i32) -> (i32, i32) {
    %c2_i32 = arith.constant 2 : i32
    %0 = arith.muli %arg0, %c2_i32 : i32
    %1 = arith.addi %0, %arg1 : i32
    %c0_i32 = arith.constant 0 : i32
    %c0_i32_0 = arith.constant 0 : i32
    return %1, %c0_i32 : i32, i32
  }
  func.func @transform_1(%arg0: i32, %arg1: i32) -> (i32, i32) {
    %c0_i32 = arith.constant 0 : i32
    %c0_i32_0 = arith.constant 0 : i32
    %c0_i32_1 = arith.constant 0 : i32
    return %c0_i32, %c0_i32_0 : i32, i32
  }
  func.func @transform_2(%arg0: i32, %arg1: i32) -> (i32, i32) {
    %c2_i32 = arith.constant 2 : i32
    %0 = arith.muli %arg0, %c2_i32 : i32
    %1 = arith.addi %0, %arg1 : i32
    %c0_i32 = arith.constant 0 : i32
    %c0_i32_0 = arith.constant 0 : i32
    return %1, %c0_i32 : i32, i32
  }
  func.func @transform_3(%arg0: i32, %arg1: i32) -> (i32, i32, i32) {
    %c0_i32 = arith.constant 0 : i32
    %c0_i32_0 = arith.constant 0 : i32
    %c0_i32_1 = arith.constant 0 : i32
    return %arg0, %c0_i32, %c0_i32_0 : i32, i32, i32
  }
  func.func @transform_4(%arg0: i32, %arg1: i32) -> (i32, i32, i32) {
    %c0_i32 = arith.constant 0 : i32
    %c0_i32_0 = arith.constant 0 : i32
    %c0_i32_1 = arith.constant 0 : i32
    return %arg0, %c0_i32, %c0_i32_0 : i32, i32, i32
  }
}

</mosaic_0001>

<llo_original>
// kernel: tpu_custom_call.1
$region0: #{tpu_custom_call.1}
  #allocation0 [shape = 'u32[]', space=smem, size = 0x4, offset = 0x4, fixed_abs, tag = 'smem constant byte address 0x4 - core index']
  #allocation1 [shape = 'u32[144,128]{1,0:T(1,128)}', space=vmem, size = 0x12000, scoped, tag = 'internal scratch']
  %s0 = inlined_call_operand.hbm [shape: bf16[512,128], index: 0, kind: input, shape index: {}]
  %s1 = inlined_call_operand.hbm [shape: bf16[128,128], index: 1, kind: input, shape index: {}]
  %s2 = inlined_call_operand.hbm [shape: bf16[512,128], index: 2, kind: output, shape index: {0}]
  %s3 = inlined_call_operand.hbm [shape: f32[2,8,128], index: 3, kind: output, shape index: {1}]
  %s4 = inlined_call_operand.hbm [shape: f32[2,8,128], index: 4, kind: output, shape index: {2}]
  %5 = xla_tuple %s2, %s3, %s4
  %s6 = sld [smem:[#allocation0]]
  $region69: #{tpu_custom_call.1} parent=0
    _
  %s8 = ssub.s32 1, %s6
  %s9 = scalar_select 0, %s8, %s6
  $region1: #{tpu_custom_call.1} parent=0
    #allocation2 [shape = 'u8[65536]{0}', space=vmem, size = 0x10000, scoped, tag = 'input window, operand 0']
    #allocation3 [shape = 's32[2]{0}', space=sflag, size = 0x8, scoped, tag = 'scoped memory for tpu_custom_call.1']
    #allocation4 [shape = 's32[2]{0}', space=sflag, size = 0x8, scoped, tag = 'scoped memory for tpu_custom_call.1']
    #allocation5 [shape = 'u8[32768]{0}', space=vmem, size = 0x8000, scoped, tag = 'input window, operand 1, single buffered']
    #allocation6 [shape = 's32[1]{0}', space=sflag, size = 0x4, scoped, tag = 'scoped memory for tpu_custom_call.1']
    #allocation7 [shape = 'u8[65536]{0}', space=vmem, size = 0x10000, scoped, tag = 'output window, operand 0']
    #allocation8 [shape = 'u8[8192]{0}', space=vmem, size = 0x2000, scoped, tag = 'output window, operand 1']
    #allocation9 [shape = 's32[2]{0}', space=sflag, size = 0x8, scoped, tag = 'scoped memory for tpu_custom_call.1']
    #allocation10 [shape = 'u8[8192]{0}', space=vmem, size = 0x2000, scoped, tag = 'output window, operand 2']
    %10 = vsyncpa [#allocation3], 0
    %s11 = scalar_lea.sflag [#allocation3], 1
    %12 = vsyncpa %s11, 0
    %13 = vsyncpa [#allocation6], 0
    %14 = vsyncpa [#allocation4], 0
    %s15 = scalar_lea.sflag [#allocation4], 1
    %16 = vsyncpa %s15, 0
    %17 = vsyncpa [#allocation9], 0
    %s18 = scalar_lea.sflag [#allocation9], 1
    %19 = vsyncpa %s18, 0
    loop: start=0, step=1, limit=6
    $region2: #{tpu_custom_call.1} parent=1 // loop_pre_header
      _
    $region3: #{tpu_custom_call.1} parent=1 // loop_header
      %s21 = sphi 0, %s25
      %p22 = scmp.ge.s32.totalorder %s21, 6
      %s28 = sphi 0, %s40
      %s29 = sphi 0, %s36
      %s30 = sphi 0, %s28
      %s31 = sphi 0, %s29
      %s32 = sphi 0, %s30
      %s33 = sphi 0, %s31
      %s47 = sphi 0, %s49
      %s50 = sphi 0, %s47
      %s51 = sphi 0, %s50
      %s67 = sphi 0, %s51
      %s71 = sphi 0, %s71
      %s73 = sphi 0, %s71
      %s74 = sphi 0, %s73
      %s88 = sphi 0, %s74
      %s98 = sphi 0, %s100
      %s101 = sphi 0, %s98
      %s102 = sphi 0, %s101
      %s118 = sphi 0, %s102
      %s124 = sphi 0, %s126
      %s127 = sphi 0, %s124
      %s128 = sphi 0, %s127
      %s144 = sphi 0, %s128
      %s150 = sphi 0, %s152
      %s153 = sphi 0, %s150
      %s154 = sphi 0, %s153
      %s170 = sphi 0, %s154
    $region4: #{tpu_custom_call.1} parent=1 // loop_header_branch
      %24 = sbr.rel (%p22) target = $region8
    $region5: #{tpu_custom_call.1} parent=1 // loop_body
      %s26 = ssub.s32 %s21, 1
      %s27 = ssub.s32 %s21, 2
      %s34 = sadd.s32 1, %s29
      %p35 = scmp.ge.s32.totalorder %s34, 2
      %s36 = scalar_select %p35, 0, %s34
      %s37 = sadd.s32 1, %s28
      %s38 = scalar_select %p35, %s37, %s28
      %p39 = scmp.ge.s32.totalorder %s38, 2
      %s40 = scalar_select %p39, 0, %s38
      %s41 = smul.u32 %s28, 2
      %s42 = sadd.s32 %s41, %s29
      %s43 = smul.u32 %s40, 2
      %s44 = sadd.s32 %s43, %s36
      %s45 = ssub.s32 %s42, %s44
      %p46 = scmp.eq.s32.totalorder %s45, 0
      %s48 = sadd.s32 %s47, 1
      %s49 = scalar_select %p46, %s47, %s48
      %p52 = pneg %p46
      %p53 = scmp.eq.s32.totalorder %s21, 3
      %p54 = por %p52, %p53
      %p55 = scmp.ne.s32.totalorder %s47, %s50
      %p56 = scmp.eq.s32.totalorder %s21, 0
      %p57 = por %p55, %p56
      %p58 = scmp.ne.s32.totalorder %s47, %s50
      %p59 = scmp.eq.s32.totalorder %s26, 3
      %p60 = por %p58, %p59
      %p61 = scmp.ne.s32.totalorder %s50, %s51
      %p62 = scmp.eq.s32.totalorder %s26, 0
      %p63 = por %p61, %p62
      %p64 = scmp.ne.s32.totalorder %s50, %s51
      %p65 = scmp.eq.s32.totalorder %s27, 3
      %p66 = por %p64, %p65
      %p68 = scmp.ne.s32.totalorder %s51, %s67
      %p69 = scmp.eq.s32.totalorder %s27, 0
      %p70 = por %p68, %p69
      %s72 = sadd.s32 %s71, 1
      %p75 = scmp.eq.s32.totalorder %s21, 3
      %p76 = scmp.ne.s32.totalorder %s71, %s73
      %p77 = scmp.eq.s32.totalorder %s21, 0
      %p78 = por %p76, %p77
      %p79 = scmp.ne.s32.totalorder %s71, %s73
      %p80 = scmp.eq.s32.totalorder %s26, 3
      %p81 = por %p79, %p80
      %p82 = scmp.ne.s32.totalorder %s73, %s74
      %p83 = scmp.eq.s32.totalorder %s26, 0
      %p84 = por %p82, %p83
      %p85 = scmp.ne.s32.totalorder %s73, %s74
      %p86 = scmp.eq.s32.totalorder %s27, 3
      %p87 = por %p85, %p86
      %p89 = scmp.ne.s32.totalorder %s74, %s88
      %p90 = scmp.eq.s32.totalorder %s27, 0
      %p91 = por %p89, %p90
      %s92 = smul.u32 %s28, 2
      %s93 = sadd.s32 %s92, %s29
      %s94 = smul.u32 %s40, 2
      %s95 = sadd.s32 %s94, %s36
      %s96 = ssub.s32 %s93, %s95
      %p97 = scmp.eq.s32.totalorder %s96, 0
      %s99 = sadd.s32 %s98, 1
      %s100 = scalar_select %p97, %s98, %s99
      %p103 = pneg %p97
      %p104 = scmp.eq.s32.totalorder %s21, 3
      %p105 = por %p103, %p104
      %p106 = scmp.ne.s32.totalorder %s98, %s101
      %p107 = scmp.eq.s32.totalorder %s21, 0
      %p108 = por %p106, %p107
      %p109 = scmp.ne.s32.totalorder %s98, %s101
      %p110 = scmp.eq.s32.totalorder %s26, 3
      %p111 = por %p109, %p110
      %p112 = scmp.ne.s32.totalorder %s101, %s102
      %p113 = scmp.eq.s32.totalorder %s26, 0
      %p114 = por %p112, %p113
      %p115 = scmp.ne.s32.totalorder %s101, %s102
      %p116 = scmp.eq.s32.totalorder %s27, 3
      %p117 = por %p115, %p116
      %p119 = scmp.ne.s32.totalorder %s102, %s118
      %p120 = scmp.eq.s32.totalorder %s27, 0
      %p121 = por %p119, %p120
      %s122 = ssub.s32 %s28, %s40
      %p123 = scmp.eq.s32.totalorder %s122, 0
      %s125 = sadd.s32 %s124, 1
      %s126 = scalar_select %p123, %s124, %s125
      %p129 = pneg %p123
      %p130 = scmp.eq.s32.totalorder %s21, 3
      %p131 = por %p129, %p130
      %p132 = scmp.ne.s32.totalorder %s124, %s127
      %p133 = scmp.eq.s32.totalorder %s21, 0
      %p134 = por %p132, %p133
      %p135 = scmp.ne.s32.totalorder %s124, %s127
      %p136 = scmp.eq.s32.totalorder %s26, 3
      %p137 = por %p135, %p136
      %p138 = scmp.ne.s32.totalorder %s127, %s128
      %p139 = scmp.eq.s32.totalorder %s26, 0
      %p140 = por %p138, %p139
      %p141 = scmp.ne.s32.totalorder %s127, %s128
      %p142 = scmp.eq.s32.totalorder %s27, 3
      %p143 = por %p141, %p142
      %p145 = scmp.ne.s32.totalorder %s128, %s144
      %p146 = scmp.eq.s32.totalorder %s27, 0
      %p147 = por %p145, %p146
      %s148 = ssub.s32 %s28, %s40
      %p149 = scmp.eq.s32.totalorder %s148, 0
      %s151 = sadd.s32 %s150, 1
      %s152 = scalar_select %p149, %s150, %s151
      %p155 = pneg %p149
      %p156 = scmp.eq.s32.totalorder %s21, 3
      %p157 = por %p155, %p156
      %p158 = scmp.ne.s32.totalorder %s150, %s153
      %p159 = scmp.eq.s32.totalorder %s21, 0
      %p160 = por %p158, %p159
      %p161 = scmp.ne.s32.totalorder %s150, %s153
      %p162 = scmp.eq.s32.totalorder %s26, 3
      %p163 = por %p161, %p162
      %p164 = scmp.ne.s32.totalorder %s153, %s154
      %p165 = scmp.eq.s32.totalorder %s26, 0
      %p166 = por %p164, %p165
      %p167 = scmp.ne.s32.totalorder %s153, %s154
      %p168 = scmp.eq.s32.totalorder %s27, 3
      %p169 = por %p167, %p168
      %p171 = scmp.ne.s32.totalorder %s154, %s170
      %p172 = scmp.eq.s32.totalorder %s27, 0
      %p173 = por %p171, %p172
      %p174 = scmp.le.s32.totalorder 1, %s21
      %p175 = scmp.lt.s32.totalorder %s21, 5
      %p176 = pnand %p174, %p175
      %p177 = pneg %p176
      // Predicated region
      $region9: #{tpu_custom_call.1} parent=5 // pred_check
        _
      $region10: #{tpu_custom_call.1} parent=5 // pred_check_branch
        %179 = sbr.rel (%p176) target = $region12
      $region11: #{tpu_custom_call.1} parent=5 // pred_region
        %s180 = ssub.s32 %s21, 1
        // Predicated region
        $region13: #{tpu_custom_call.1} parent=11 // pred_check
          %p181 = pneg %p84
        $region14: #{tpu_custom_call.1} parent=11 // pred_check_branch
          %183 = sbr.rel (%p181) target = $region16
        $region15: #{tpu_custom_call.1} parent=11 // pred_region
          %s185 = ssub.s32 1024, 1024
          %186 = vsyncadd [#allocation6], %s185
          %s187 = sshll.u32 [#allocation5], 4
          %s188 = int_to_ptr.vmem [resolvable:$true] %s187
          %193 = dma.hbm_to_vmem [thread:$0]  %s1, 1024, %s188, [#allocation6], 64, 64, 4
        $region16: #{tpu_custom_call.1} parent=11 // pred_fallthru
          _
      $region12: #{tpu_custom_call.1} parent=5 // pred_fallthru
        _
      %p194 = scmp.lt.s32.totalorder %s21, 4
      // Predicated region
      $region17: #{tpu_custom_call.1} parent=5 // pred_check
        %p195 = pneg %p194
      $region18: #{tpu_custom_call.1} parent=5 // pred_check_branch
        %197 = sbr.rel (%p195) target = $region20
      $region19: #{tpu_custom_call.1} parent=5 // pred_region
        // Predicated region
        $region21: #{tpu_custom_call.1} parent=19 // pred_check
          %p198 = pneg %p57
        $region22: #{tpu_custom_call.1} parent=19 // pred_check_branch
          %200 = sbr.rel (%p198) target = $region24
        $region23: #{tpu_custom_call.1} parent=19 // pred_region
          %s201 = sand.u32 %s47, 1
          %s202 = scalar_lea.sflag [#allocation3], %s201
          %s203 = sand.u32 %s47, 1
          %s204 = smul.addr %s203, 64
          %s205 = scalar_lea.vmem [#allocation2], %s204
          %s206 = smul.u32 %s28, 2
          %s207 = sadd.s32 %s206, %s29
          %s208 = smul.u32 16, %s207
          %s210 = ssub.s32 1024, 1024
          %211 = vsyncadd %s202, %s210
          %s212 = smul.addr %s208, 64
          %s213 = scalar_lea.hbm %s0, %s212
          %s214 = sshll.u32 %s205, 4
          %s215 = int_to_ptr.vmem [resolvable:$true] %s214
          %220 = dma.hbm_to_vmem [thread:$0]  %s213, 1024, %s215, %s202, 64, 64, 4
        $region24: #{tpu_custom_call.1} parent=19 // pred_fallthru
          _
      $region20: #{tpu_custom_call.1} parent=5 // pred_fallthru
        _
      %p221 = scmp.le.s32.totalorder 1, %s21
      %p222 = scmp.lt.s32.totalorder %s21, 5
      %p223 = pnand %p221, %p222
      %p224 = pneg %p223
      // Predicated region
      $region25: #{tpu_custom_call.1} parent=5 // pred_check
        _
      $region26: #{tpu_custom_call.1} parent=5 // pred_check_branch
        %226 = sbr.rel (%p223) target = $region28
      $region27: #{tpu_custom_call.1} parent=5 // pred_region
        %s227 = ssub.s32 %s21, 1
        %s228 = sand.u32 %s50, 1
        %s229 = scalar_lea.sflag [#allocation3], %s228
        %s230 = sand.u32 %s50, 1
        %s231 = smul.addr %s230, 64
        %s232 = scalar_lea.vmem [#allocation2], %s231
        // Predicated region
        $region29: #{tpu_custom_call.1} parent=27 // pred_check
          %p233 = pneg %p63
        $region30: #{tpu_custom_call.1} parent=27 // pred_check_branch
          %235 = sbr.rel (%p233) target = $region32
        $region31: #{tpu_custom_call.1} parent=27 // pred_region
          %236 = dma.done %s229, 1024
        $region32: #{tpu_custom_call.1} parent=27 // pred_fallthru
          _
        // Predicated region
        $region33: #{tpu_custom_call.1} parent=27 // pred_check
          %p237 = pneg %p84
        $region34: #{tpu_custom_call.1} parent=27 // pred_check_branch
          %239 = sbr.rel (%p237) target = $region36
        $region35: #{tpu_custom_call.1} parent=27 // pred_region
          %240 = dma.done [#allocation6], 1024
        $region36: #{tpu_custom_call.1} parent=27 // pred_fallthru
          _
        %s241 = sand.u32 %s50, 1
        %s242 = scalar_lea.sflag [#allocation3], %s241
        %s243 = sand.u32 %s50, 1
        %s244 = smul.addr %s243, 64
        %s245 = scalar_lea.vmem [#allocation2], %s244
        %p246 = pneg %p63
        %p247 = pneg %p60
        %p248 = pneg %p84
        %p249 = pneg %p81
        %p250 = pneg %p114
        %p251 = pneg %p111
        %s252 = sand.u32 %s101, 1
        %s253 = scalar_lea.sflag [#allocation4], %s252
        %s254 = sand.u32 %s101, 1
        %s255 = smul.addr %s254, 64
        %s256 = scalar_lea.vmem [#allocation7], %s255
        %p257 = pneg %p140
        %p258 = pneg %p137
        %s259 = sand.u32 %s26, 1
        %s260 = scalar_lea.sflag [#allocation9], %s259
        %s261 = sand.u32 %s127, 1
        %s262 = smul.addr %s261, 8
        %s263 = scalar_lea.vmem [#allocation8], %s262
        %p264 = pneg %p166
        %p265 = pneg %p163
        %s266 = sand.u32 %s26, 1
        %s267 = scalar_lea.sflag [#allocation9], %s266
        %s268 = sand.u32 %s153, 1
        %s269 = smul.addr %s268, 8
        %s270 = scalar_lea.vmem [#allocation10], %s269
        %s271 = smul.u32 %s30, 2
        %s272 = sadd.s32 %s271, %s31
        %s273 = smul.u32 16, %s272
        %s274 = smul.u32 %s30, 2
        %s275 = sadd.s32 %s274, %s31
        %s276 = smul.u32 16, %s275
        %p278 = scmp.eq.s32.totalorder %s31, 0
        // Predicated region
        $region37: #{tpu_custom_call.1} parent=27 // pred_check
          %p279 = pneg %p278
        $region38: #{tpu_custom_call.1} parent=27 // pred_check_branch
          %281 = sbr.rel (%p279) target = $region40
        $region39: #{tpu_custom_call.1} parent=27 // pred_region
          %282 = vst [vmem:[%s263] sm:$0xff] 0.0
          %283 = vst [vmem:[%s270] sm:$0xff] 0.0
        $region40: #{tpu_custom_call.1} parent=27 // pred_fallthru
          _
        %v284 = vld [vmem:[%s232] sm:$0xf]
        %v285 = vld [vmem:[%s232 + $0x4] sm:$0xf]
        %v286 = vld [vmem:[%s232 + $0x8] sm:$0xf]
        %v287 = vld [vmem:[%s232 + $0xc] sm:$0xf]
        %v288 = vld [vmem:[%s232 + $0x10] sm:$0xf]
        %v289 = vld [vmem:[%s232 + $0x14] sm:$0xf]
        %v290 = vld [vmem:[%s232 + $0x18] sm:$0xf]
        %v291 = vld [vmem:[%s232 + $0x1c] sm:$0xf]
        %v292 = vld [vmem:[%s232 + $0x20] sm:$0xf]
        %v293 = vld [vmem:[%s232 + $0x24] sm:$0xf]
        %v294 = vld [vmem:[%s232 + $0x28] sm:$0xf]
        %v295 = vld [vmem:[%s232 + $0x2c] sm:$0xf]
        %v296 = vld [vmem:[%s232 + $0x30] sm:$0xf]
        %v297 = vld [vmem:[%s232 + $0x34] sm:$0xf]
        %v298 = vld [vmem:[%s232 + $0x38] sm:$0xf]
        %v299 = vld [vmem:[%s232 + $0x3c] sm:$0xf]
        %v300 = vld [vmem:[#allocation5] sm:$0xf]
        %v301 = vld [vmem:[#allocation5 + $0x4] sm:$0xf]
        %v302 = vld [vmem:[#allocation5 + $0x8] sm:$0xf]
        %v303 = vld [vmem:[#allocation5 + $0xc] sm:$0xf]
        %v304 = vld [vmem:[#allocation5 + $0x10] sm:$0xf]
        %v305 = vld [vmem:[#allocation5 + $0x14] sm:$0xf]
        %v306 = vld [vmem:[#allocation5 + $0x18] sm:$0xf]
        %v307 = vld [vmem:[#allocation5 + $0x1c] sm:$0xf]
        %v308 = vld [vmem:[#allocation5 + $0x20] sm:$0xf]
        %v309 = vld [vmem:[#allocation5 + $0x24] sm:$0xf]
        %v310 = vld [vmem:[#allocation5 + $0x28] sm:$0xf]
        %v311 = vld [vmem:[#allocation5 + $0x2c] sm:$0xf]
        %v312 = vld [vmem:[#allocation5 + $0x30] sm:$0xf]
        %v313 = vld [vmem:[#allocation5 + $0x34] sm:$0xf]
        %v314 = vld [vmem:[#allocation5 + $0x38] sm:$0xf]
        %v315 = vld [vmem:[#allocation5 + $0x3c] sm:$0xf]
        %v332 = vunpack.c.l.b16 %v284
        %v333 = vunpack.c.l.b16 %v285
        %v334 = vunpack.c.l.b16 %v286
        %v335 = vunpack.c.l.b16 %v287
        %v336 = vunpack.c.l.b16 %v288
        %v337 = vunpack.c.l.b16 %v289
        %v338 = vunpack.c.l.b16 %v290
        %v339 = vunpack.c.l.b16 %v291
        %v340 = vunpack.c.l.b16 %v292
        %v341 = vunpack.c.l.b16 %v293
        %v342 = vunpack.c.l.b16 %v294
        %v343 = vunpack.c.l.b16 %v295
        %v344 = vunpack.c.l.b16 %v296
        %v345 = vunpack.c.l.b16 %v297
        %v346 = vunpack.c.l.b16 %v298
        %v347 = vunpack.c.l.b16 %v299
        %v348 = vpack.c.b16 %v333, %v332
        %v349 = vpack.c.b16 %v335, %v334
        %v350 = vpack.c.b16 %v337, %v336
        %v351 = vpack.c.b16 %v339, %v338
        %v352 = vpack.c.b16 %v341, %v340
        %v353 = vpack.c.b16 %v343, %v342
        %v354 = vpack.c.b16 %v345, %v344
        %v355 = vpack.c.b16 %v347, %v346
        %v380 = vunpack.c.l.b16 %v300
        %v381 = vunpack.c.l.b16 %v301
        %v382 = vunpack.c.l.b16 %v302
        %v383 = vunpack.c.l.b16 %v303
        %v384 = vunpack.c.l.b16 %v304
        %v385 = vunpack.c.l.b16 %v305
        %v386 = vunpack.c.l.b16 %v306
        %v387 = vunpack.c.l.b16 %v307
        %v388 = vunpack.c.l.b16 %v308
        %v389 = vunpack.c.l.b16 %v309
        %v390 = vunpack.c.l.b16 %v310
        %v391 = vunpack.c.l.b16 %v311
        %v392 = vunpack.c.l.b16 %v312
        %v393 = vunpack.c.l.b16 %v313
        %v394 = vunpack.c.l.b16 %v314
        %v395 = vunpack.c.l.b16 %v315
        %v396 = vpack.c.b16 %v381, %v380
        %v397 = vpack.c.b16 %v383, %v382
        %v398 = vpack.c.b16 %v385, %v384
        %v399 = vpack.c.b16 %v387, %v386
        %v400 = vpack.c.b16 %v389, %v388
        %v401 = vpack.c.b16 %v391, %v390
        %v402 = vpack.c.b16 %v393, %v392
        %v403 = vpack.c.b16 %v395, %v394
        %412 = vmatprep.subr.bf16.mxu0 0
        %413 = vmatpush1.bf16.msra.mxu0 %v396
        %414 = vmatprep.subr.bf16.mxu0 0
        %415 = vmatpush1.bf16.msra.mxu0 %v397
        %416 = vmatprep.subr.bf16.mxu0 0
        %417 = vmatpush1.bf16.msra.mxu0 %v398
        %418 = vmatprep.subr.bf16.mxu0 0
        %419 = vmatpush1.bf16.msra.mxu0 %v399
        %420 = vmatprep.subr.bf16.mxu0 0
        %421 = vmatpush1.bf16.msra.mxu0 %v400
        %422 = vmatprep.subr.bf16.mxu0 0
        %423 = vmatpush1.bf16.msra.mxu0 %v401
        %424 = vmatprep.subr.bf16.mxu0 0
        %425 = vmatpush1.bf16.msra.mxu0 %v402
        %426 = vmatprep.subr.bf16.mxu0 0
        %427 = vmatpush1.bf16.msra.mxu0 %v403
        %428 = vmatprep.subr.bf16.mxu0 0
        %429 = vmatpush1.bf16.msra.mxu0 0
        %430 = vmatprep.subr.bf16.mxu0 0
        %431 = vmatpush1.bf16.msra.mxu0 0
        %432 = vmatprep.subr.bf16.mxu0 0
        %433 = vmatpush1.bf16.msra.mxu0 0
        %434 = vmatprep.subr.bf16.mxu0 0
        %435 = vmatpush1.bf16.msra.mxu0 0
        %436 = vmatprep.subr.bf16.mxu0 0
        %437 = vmatpush1.bf16.msra.mxu0 0
        %438 = vmatprep.subr.bf16.mxu0 0
        %439 = vmatpush1.bf16.msra.mxu0 0
        %440 = vmatprep.subr.bf16.mxu0 0
        %441 = vmatpush1.bf16.msra.mxu0 0
        %442 = vmatprep.subr.bf16.mxu0 0
        %443 = vmatpush1.bf16.msra.mxu0 0
        %444 = vmatprep.mubr.bf16.mxu0 0
        %445 = vmatmul.mubr.bf16.gmra.mrb[0].mxu0 %v348
        %v446 = vpop.f32.mrb[0].mxu0
        %v447 = vadd.f32 0.0, %v446
        %v448 = vpop.f32.mrb[0].mxu0
        %v449 = vpop.f32.mrb[0].mxu0
        %v450 = vadd.f32 0.0, %v449
        %v451 = vpop.f32.mrb[0].mxu0
        %452 = vmatprep.mubr.bf16.mxu0 0
        %453 = vmatmul.mubr.bf16.gmra.mrb[0].mxu0 %v349
        %v454 = vpop.f32.mrb[0].mxu0
        %v455 = vadd.f32 0.0, %v454
        %v456 = vpop.f32.mrb[0].mxu0
        %v457 = vpop.f32.mrb[0].mxu0
        %v458 = vadd.f32 0.0, %v457
        %v459 = vpop.f32.mrb[0].mxu0
        %460 = vmatprep.mubr.bf16.mxu0 0
        %461 = vmatmul.mubr.bf16.gmra.mrb[0].mxu0 %v350
        %v462 = vpop.f32.mrb[0].mxu0
        %v463 = vadd.f32 0.0, %v462
        %v464 = vpop.f32.mrb[0].mxu0
        %v465 = vpop.f32.mrb[0].mxu0
        %v466 = vadd.f32 0.0, %v465
        %v467 = vpop.f32.mrb[0].mxu0
        %468 = vmatprep.mubr.bf16.mxu0 0
        %469 = vmatmul.mubr.bf16.gmra.mrb[0].mxu0 %v351
        %v470 = vpop.f32.mrb[0].mxu0
        %v471 = vadd.f32 0.0, %v470
        %v472 = vpop.f32.mrb[0].mxu0
        %v473 = vpop.f32.mrb[0].mxu0
        %v474 = vadd.f32 0.0, %v473
        %v475 = vpop.f32.mrb[0].mxu0
        %476 = vmatprep.mubr.bf16.mxu0 0
        %477 = vmatmul.mubr.bf16.gmra.mrb[0].mxu0 %v352
        %v478 = vpop.f32.mrb[0].mxu0
        %v479 = vadd.f32 0.0, %v478
        %v480 = vpop.f32.mrb[0].mxu0
        %v481 = vpop.f32.mrb[0].mxu0
        %v482 = vadd.f32 0.0, %v481
        %v483 = vpop.f32.mrb[0].mxu0
        %484 = vmatprep.mubr.bf16.mxu0 0
        %485 = vmatmul.mubr.bf16.gmra.mrb[0].mxu0 %v353
        %v486 = vpop.f32.mrb[0].mxu0
        %v487 = vadd.f32 0.0, %v486
        %v488 = vpop.f32.mrb[0].mxu0
        %v489 = vpop.f32.mrb[0].mxu0
        %v490 = vadd.f32 0.0, %v489
        %v491 = vpop.f32.mrb[0].mxu0
        %492 = vmatprep.mubr.bf16.mxu0 0
        %493 = vmatmul.mubr.bf16.gmra.mrb[0].mxu0 %v354
        %v494 = vpop.f32.mrb[0].mxu0
        %v495 = vadd.f32 0.0, %v494
        %v496 = vpop.f32.mrb[0].mxu0
        %v497 = vpop.f32.mrb[0].mxu0
        %v498 = vadd.f32 0.0, %v497
        %v499 = vpop.f32.mrb[0].mxu0
        %500 = vmatprep.mubr.bf16.mxu0 0
        %501 = vmatmul.mubr.bf16.gmra.mrb[0].mxu0 %v355
        %v502 = vpop.f32.mrb[0].mxu0
        %v503 = vadd.f32 0.0, %v502
        %v504 = vpop.f32.mrb[0].mxu0
        %v505 = vpop.f32.mrb[0].mxu0
        %v506 = vadd.f32 0.0, %v505
        %v507 = vpop.f32.mrb[0].mxu0
        %508 = vdwg.mxu0
        %v509 = vadd.f32 %v447, %v450
        %v510 = vadd.f32 %v509, %v455
        %v511 = vadd.f32 %v510, %v458
        %v512 = vadd.f32 %v511, %v463
        %v513 = vadd.f32 %v512, %v466
        %v514 = vadd.f32 %v513, %v471
        %v515 = vadd.f32 %v514, %v474
        %v516 = vadd.f32 %v515, %v479
        %v517 = vadd.f32 %v516, %v482
        %v518 = vadd.f32 %v517, %v487
        %v519 = vadd.f32 %v518, %v490
        %v520 = vadd.f32 %v519, %v495
        %v521 = vadd.f32 %v520, %v498
        %v522 = vadd.f32 %v521, %v503
        %v523 = vadd.f32 %v522, %v506
        %v524 = vrot.slane %v523, 4
        %v525 = vadd.f32 %v523, %v524
        %v526 = vrot.slane %v525, 2
        %v527 = vadd.f32 %v525, %v526
        %v528 = vrot.slane %v527, 1
        %v529 = vadd.f32 %v527, %v528
        %v530 = vmul.f32 %v447, %v447
        %v531 = vmul.f32 %v450, %v450
        %v532 = vmul.f32 %v455, %v455
        %v533 = vmul.f32 %v458, %v458
        %v534 = vmul.f32 %v463, %v463
        %v535 = vmul.f32 %v466, %v466
        %v536 = vmul.f32 %v471, %v471
        %v537 = vmul.f32 %v474, %v474
        %v538 = vmul.f32 %v479, %v479
        %v539 = vmul.f32 %v482, %v482
        %v540 = vmul.f32 %v487, %v487
        %v541 = vmul.f32 %v490, %v490
        %v542 = vmul.f32 %v495, %v495
        %v543 = vmul.f32 %v498, %v498
        %v544 = vmul.f32 %v503, %v503
        %v545 = vmul.f32 %v506, %v506
        %v546 = vadd.f32 %v530, %v531
        %v547 = vadd.f32 %v546, %v532
        %v548 = vadd.f32 %v547, %v533
        %v549 = vadd.f32 %v548, %v534
        %v550 = vadd.f32 %v549, %v535
        %v551 = vadd.f32 %v550, %v536
        %v552 = vadd.f32 %v551, %v537
        %v553 = vadd.f32 %v552, %v538
        %v554 = vadd.f32 %v553, %v539
        %v555 = vadd.f32 %v554, %v540
        %v556 = vadd.f32 %v555, %v541
        %v557 = vadd.f32 %v556, %v542
        %v558 = vadd.f32 %v557, %v543
        %v559 = vadd.f32 %v558, %v544
        %v560 = vadd.f32 %v559, %v545
        %v561 = vrot.slane %v560, 4
        %v562 = vadd.f32 %v560, %v561
        %v563 = vrot.slane %v562, 2
        %v564 = vadd.f32 %v562, %v563
        %v565 = vrot.slane %v564, 1
        %v566 = vadd.f32 %v564, %v565
        %v567 = vld [vmem:[%s263] sm:$0xff]
        %v568 = vadd.f32 %v567, %v529
        %569 = vst [vmem:[%s263] sm:$0xff] %v568
        %v570 = vld [vmem:[%s270] sm:$0xff]
        %v571 = vadd.f32 %v570, %v566
        %572 = vst [vmem:[%s270] sm:$0xff] %v571
        %v573 = vpack.c.bf16 %v450, %v447
        %v574 = vpack.c.bf16 %v458, %v455
        %v575 = vpack.c.bf16 %v466, %v463
        %v576 = vpack.c.bf16 %v474, %v471
        %v577 = vpack.c.bf16 %v482, %v479
        %v578 = vpack.c.bf16 %v490, %v487
        %v579 = vpack.c.bf16 %v498, %v495
        %v580 = vpack.c.bf16 %v506, %v503
        %v589 = vunpack.c.l.b16 %v573
        %v590 = vunpack.c.h.b16 %v573
        %v591 = vunpack.c.l.b16 %v574
        %v592 = vunpack.c.h.b16 %v574
        %v593 = vunpack.c.l.b16 %v575
        %v594 = vunpack.c.h.b16 %v575
        %v595 = vunpack.c.l.b16 %v576
        %v596 = vunpack.c.h.b16 %v576
        %v597 = vunpack.c.l.b16 %v577
        %v598 = vunpack.c.h.b16 %v577
        %v599 = vunpack.c.l.b16 %v578
        %v600 = vunpack.c.h.b16 %v578
        %v601 = vunpack.c.l.b16 %v579
        %v602 = vunpack.c.h.b16 %v579
        %v603 = vunpack.c.l.b16 %v580
        %v604 = vunpack.c.h.b16 %v580
        %v605 = vpack.c.b16 %v589, %v589
        %v606 = vpack.c.b16 %v590, %v590
        %v607 = vpack.c.b16 %v591, %v591
        %v608 = vpack.c.b16 %v592, %v592
        %v609 = vpack.c.b16 %v593, %v593
        %v610 = vpack.c.b16 %v594, %v594
        %v611 = vpack.c.b16 %v595, %v595
        %v612 = vpack.c.b16 %v596, %v596
        %v613 = vpack.c.b16 %v597, %v597
        %v614 = vpack.c.b16 %v598, %v598
        %v615 = vpack.c.b16 %v599, %v599
        %v616 = vpack.c.b16 %v600, %v600
        %v617 = vpack.c.b16 %v601, %v601
        %v618 = vpack.c.b16 %v602, %v602
        %v619 = vpack.c.b16 %v603, %v603
        %v620 = vpack.c.b16 %v604, %v604
        %637 = vst [vmem:[%s256] sm:$0xf] %v605
        %638 = vst [vmem:[%s256 + $0x4] sm:$0xf] %v606
        %639 = vst [vmem:[%s256 + $0x8] sm:$0xf] %v607
        %640 = vst [vmem:[%s256 + $0xc] sm:$0xf] %v608
        %641 = vst [vmem:[%s256 + $0x10] sm:$0xf] %v609
        %642 = vst [vmem:[%s256 + $0x14] sm:$0xf] %v610
        %643 = vst [vmem:[%s256 + $0x18] sm:$0xf] %v611
        %644 = vst [vmem:[%s256 + $0x1c] sm:$0xf] %v612
        %645 = vst [vmem:[%s256 + $0x20] sm:$0xf] %v613
        %646 = vst [vmem:[%s256 + $0x24] sm:$0xf] %v614
        %647 = vst [vmem:[%s256 + $0x28] sm:$0xf] %v615
        %648 = vst [vmem:[%s256 + $0x2c] sm:$0xf] %v616
        %649 = vst [vmem:[%s256 + $0x30] sm:$0xf] %v617
        %650 = vst [vmem:[%s256 + $0x34] sm:$0xf] %v618
        %651 = vst [vmem:[%s256 + $0x38] sm:$0xf] %v619
        %652 = vst [vmem:[%s256 + $0x3c] sm:$0xf] %v620
        %s653 = sand.u32 %s101, 1
        %s654 = scalar_lea.sflag [#allocation4], %s653
        %s655 = sand.u32 %s101, 1
        %s656 = smul.addr %s655, 64
        %s657 = scalar_lea.vmem [#allocation7], %s656
        %s658 = sand.u32 %s26, 1
        %s659 = scalar_lea.sflag [#allocation9], %s658
        %s660 = sand.u32 %s127, 1
        %s661 = smul.addr %s660, 8
        %s662 = scalar_lea.vmem [#allocation8], %s661
        %s663 = sand.u32 %s26, 1
        %s664 = scalar_lea.sflag [#allocation9], %s663
        %s665 = sand.u32 %s153, 1
        %s666 = smul.addr %s665, 8
        %s667 = scalar_lea.vmem [#allocation10], %s666
        // Predicated region
        $region41: #{tpu_custom_call.1} parent=27 // pred_check
          %p668 = pneg %p111
        $region42: #{tpu_custom_call.1} parent=27 // pred_check_branch
          %670 = sbr.rel (%p668) target = $region44
        $region43: #{tpu_custom_call.1} parent=27 // pred_region
          %s671 = smul.u32 %s30, 2
          %s672 = sadd.s32 %s671, %s31
          %s673 = smul.u32 16, %s672
          %s675 = ssub.s32 1024, 1024
          %676 = vsyncadd %s654, %s675
          %s677 = smul.addr %s673, 64
          %s678 = scalar_lea.hbm %s2, %s677
          %s679 = sshll.u32 %s657, 4
          %s680 = int_to_ptr.vmem [resolvable:$true] %s679
          %685 = dma.vmem_to_hbm [thread:$0]  %s680, 1024, %s678, %s654, 64, 64, 4
        $region44: #{tpu_custom_call.1} parent=27 // pred_fallthru
          _
        // Predicated region
        $region45: #{tpu_custom_call.1} parent=27 // pred_check
          %p686 = pneg %p137
        $region46: #{tpu_custom_call.1} parent=27 // pred_check_branch
          %688 = sbr.rel (%p686) target = $region48
        $region47: #{tpu_custom_call.1} parent=27 // pred_region
          %s690 = ssub.s32 128, 128
          %691 = vsyncadd %s659, %s690
          %s692 = smul.addr %s30, 128
          %s693 = scalar_lea.hbm %s3, %s692
          %s695 = sshll.u32 %s662, 4
          %s696 = int_to_ptr.vmem [resolvable:$true] %s695
          %698 = dma.vmem_to_hbm [thread:$0]  %s696, 128, %s693, %s659
        $region48: #{tpu_custom_call.1} parent=27 // pred_fallthru
          _
        // Predicated region
        $region49: #{tpu_custom_call.1} parent=27 // pred_check
          %p699 = pneg %p163
        $region50: #{tpu_custom_call.1} parent=27 // pred_check_branch
          %701 = sbr.rel (%p699) target = $region52
        $region51: #{tpu_custom_call.1} parent=27 // pred_region
          %s703 = ssub.s32 128, 128
          %704 = vsyncadd %s664, %s703
          %s705 = smul.addr %s30, 128
          %s706 = scalar_lea.hbm %s4, %s705
          %s708 = sshll.u32 %s667, 4
          %s709 = int_to_ptr.vmem [resolvable:$true] %s708
          %711 = dma.vmem_to_hbm [thread:$0]  %s709, 128, %s706, %s664
        $region52: #{tpu_custom_call.1} parent=27 // pred_fallthru
          _
      $region28: #{tpu_custom_call.1} parent=5 // pred_fallthru
        _
      %p712 = scmp.le.s32.totalorder 2, %s21
      // Predicated region
      $region53: #{tpu_custom_call.1} parent=5 // pred_check
        %p713 = pneg %p712
      $region54: #{tpu_custom_call.1} parent=5 // pred_check_branch
        %715 = sbr.rel (%p713) target = $region56
      $region55: #{tpu_custom_call.1} parent=5 // pred_region
        %s716 = ssub.s32 %s21, 2
        // Predicated region
        $region57: #{tpu_custom_call.1} parent=55 // pred_check
          %p717 = pneg %p117
        $region58: #{tpu_custom_call.1} parent=55 // pred_check_branch
          %719 = sbr.rel (%p717) target = $region60
        $region59: #{tpu_custom_call.1} parent=55 // pred_region
          %s720 = sand.u32 %s102, 1
          %s721 = scalar_lea.sflag [#allocation4], %s720
          %s722 = sand.u32 %s102, 1
          %s723 = smul.addr %s722, 64
          %s724 = scalar_lea.vmem [#allocation7], %s723
          %725 = dma.done %s721, 1024
        $region60: #{tpu_custom_call.1} parent=55 // pred_fallthru
          _
        // Predicated region
        $region61: #{tpu_custom_call.1} parent=55 // pred_check
          %p726 = pneg %p143
        $region62: #{tpu_custom_call.1} parent=55 // pred_check_branch
          %728 = sbr.rel (%p726) target = $region64
        $region63: #{tpu_custom_call.1} parent=55 // pred_region
          %s729 = sand.u32 %s27, 1
          %s730 = scalar_lea.sflag [#allocation9], %s729
          %s731 = sand.u32 %s128, 1
          %s732 = smul.addr %s731, 8
          %s733 = scalar_lea.vmem [#allocation8], %s732
          %734 = dma.done %s730, 128
        $region64: #{tpu_custom_call.1} parent=55 // pred_fallthru
          _
        // Predicated region
        $region65: #{tpu_custom_call.1} parent=55 // pred_check
          %p735 = pneg %p169
        $region66: #{tpu_custom_call.1} parent=55 // pred_check_branch
          %737 = sbr.rel (%p735) target = $region68
        $region67: #{tpu_custom_call.1} parent=55 // pred_region
          %s738 = sand.u32 %s27, 1
          %s739 = scalar_lea.sflag [#allocation9], %s738
          %s740 = sand.u32 %s154, 1
          %s741 = smul.addr %s740, 8
          %s742 = scalar_lea.vmem [#allocation10], %s741
          %743 = dma.done %s739, 128
        $region68: #{tpu_custom_call.1} parent=55 // pred_fallthru
          _
      $region56: #{tpu_custom_call.1} parent=5 // pred_fallthru
        _
    $region6: #{tpu_custom_call.1} parent=1 // loop_footer
      %s25 = sadd.s32 1, %s21
    $region7: #{tpu_custom_call.1} parent=1 // loop_footer_branch
      %20 = sbr.rel target = $region3
    $region8: #{tpu_custom_call.1} parent=1 // loop_exit
      _
    %744 = vsyncpa [#allocation3], 1
    %s745 = scalar_lea.sflag [#allocation3], 1
    %746 = vsyncpa %s745, 1
    %747 = vsyncpa [#allocation6], 1
    %748 = vsyncpa [#allocation4], 1
    %s749 = scalar_lea.sflag [#allocation4], 1
    %750 = vsyncpa %s749, 1
    %751 = vsyncpa [#allocation9], 1
    %s752 = scalar_lea.sflag [#allocation9], 1
    %753 = vsyncpa %s752, 1

</llo_original>
